<compile_context>
chip_gen: v5e
topology: v5e:2x2
jax: 0.10.0
libtpu: 0.0.40
codegen_flags: <defaults>
</compile_context>

<pallas_src>
import jax
import jax.numpy as jnp
from jax.experimental import pallas as pl
from jax.experimental.pallas import tpu as pltpu


def _round_up(n, m):
    return ((n + m - 1) // m) * m


def _cdiv(a, b):
    return -(-a // b)


def _tiles_for_batch(B, tile_b):
    """Balanced batch tiles: multiple of 128, padding waste < 128 rows/tile,
    and >=2 tiles when there is enough work for both v7x TensorCores."""
    tile_b = max(128, _round_up(tile_b, 128))
    num_tiles = max(1, _cdiv(B, tile_b))
    if num_tiles == 1 and B > 256:
        num_tiles = 2                       # keep both v7x TCs busy
    tb = _round_up(_cdiv(B, num_tiles), 128)
    num_tiles = _cdiv(B, tb)
    return tb, num_tiles


def nnue_kernel(x_ref, w1_ref, b1_ref, w2_ref, b2_ref, w3_ref, b3_ref, out_ref):
    # x_ref: (TB, 64) f32 (cast to bf16 in-kernel; VPU work hidden under MXU)
    # w1: (64,128) bf16   w2: (128,128) bf16
    # w3: (8, 128) bf16 (row 0 = real weights, rows 1..7 zero)
    # b1/b2: (1,128) f32  b3: (1,1) f32 in SMEM
    # out_ref: (1, 1, TB) f32
    x = x_ref[...].astype(jnp.bfloat16)
    h1 = jnp.dot(x, w1_ref[...], preferred_element_type=jnp.float32) + b1_ref[...]
    h1 = jnp.maximum(h1.astype(jnp.bfloat16), 0.0)            # bf16 epilogue (TB,128)
    h2 = jnp.dot(h1, w2_ref[...], preferred_element_type=jnp.float32) + b2_ref[...]
    h2 = jnp.maximum(h2.astype(jnp.bfloat16), 0.0)            # (TB,128) bf16
    # Final layer as an NT matmul: (8,128) . (TB,128)^T -> (8, TB).
    # Row 0 is the real output and is already lane-dense along the batch tile.
    out8 = jax.lax.dot_general(
        w3_ref[...], h2,
        dimension_numbers=(((1,), (1,)), ((), ())),
        preferred_element_type=jnp.float32)                   # (8, TB)
    out_ref[0] = out8[0:1, :] + b3_ref[0, 0]                  # (1, TB)


def nnue_forward(x, params, *, tile_b=4096):
    """x: any shape with trailing 64 features (mirrors x.view(-1, 64)).
    params: (w1 (64,128), b1 (1,128), w2 (128,128), b2 (1,128), w3 (128,1), b3 (1,1)).
    Returns (B, 1) float32."""
    w1, b1, w2, b2, w3, b3 = params
    x = x.reshape(-1, 64)
    B = x.shape[0]
    if B == 0:
        return jnp.zeros((0, 1), jnp.float32)

    tb, num_tiles = _tiles_for_batch(B, tile_b)

    # Weights/biases are tiny; cast them in the wrapper.  x stays in its own
    # dtype (cast fused into the kernel), and the ragged last batch tile is
    # handled by block overhang instead of a full-array jnp.pad.
    w1_bf = w1.astype(jnp.bfloat16)
    w2_bf = w2.astype(jnp.bfloat16)
    w3_row = w3.reshape(1, 128).astype(jnp.bfloat16)
    w3_pad = jnp.zeros((8, 128), jnp.bfloat16).at[0:1, :].set(w3_row)
    b1_f = b1.reshape(1, 128).astype(jnp.float32)
    b2_f = b2.reshape(1, 128).astype(jnp.float32)
    b3_f = b3.reshape(1, 1).astype(jnp.float32)

    out = pl.pallas_call(
        nnue_kernel,
        out_shape=jax.ShapeDtypeStruct((num_tiles, 1, tb), jnp.float32),
        grid_spec=pltpu.PrefetchScalarGridSpec(
            num_scalar_prefetch=0,
            grid=(num_tiles,),
            in_specs=[
                pl.BlockSpec((tb, 64), lambda i: (i, 0)),      # x tile (streamed)
                pl.BlockSpec((64, 128), lambda i: (0, 0)),     # W1 (resident)
                pl.BlockSpec((1, 128), lambda i: (0, 0)),      # b1
                pl.BlockSpec((128, 128), lambda i: (0, 0)),    # W2
                pl.BlockSpec((1, 128), lambda i: (0, 0)),      # b2
                pl.BlockSpec((8, 128), lambda i: (0, 0)),      # W3 (row-padded)
                pl.BlockSpec(memory_space=pltpu.MemorySpace.SMEM),  # b3 scalar
            ],
            out_specs=pl.BlockSpec((1, 1, tb), lambda i: (i, 0, 0)),
        ),
        compiler_params=pltpu.CompilerParams(
            dimension_semantics=("parallel",),   # megacore-shardable on v7x
            vmem_limit_bytes=32 * 1024 * 1024,   # headroom for large tiles, all gens
        ),
    )(x, w1_bf, b1_f, w2_bf, b2_f, w3_pad, b3_f)

    # (num_tiles, 1, tb) -> (num_tiles*tb, 1) -> slice the overhang rows off.
    return out.reshape(num_tiles * tb, 1)[:B]


def init_params(key):
    """Deterministic synthetic init matching nn.Linear(64,128)/(128,128)/(128,1)
    shapes (weights kept as [in, out] = transpose of PyTorch's [out, in])."""
    k1, k2, k3, k4, k5, k6 = jax.random.split(key, 6)
    w1 = jax.random.normal(k1, (64, 128), jnp.float32) * (1.0 / jnp.sqrt(64.0))
    b1 = jax.random.normal(k2, (1, 128), jnp.float32) * 0.01
    w2 = jax.random.normal(k3, (128, 128), jnp.float32) * (1.0 / jnp.sqrt(128.0))
    b2 = jax.random.normal(k4, (1, 128), jnp.float32) * 0.01
    w3 = jax.random.normal(k5, (128, 1), jnp.float32) * (1.0 / jnp.sqrt(128.0))
    b3 = jax.random.normal(k6, (1, 1), jnp.float32) * 0.01
    return (w1, b1, w2, b2, w3, b3)


def nnue_ref(x, params, dtype=jnp.bfloat16):
    """Reference with the same bf16-input / f32-accumulation precision recipe."""
    w1, b1, w2, b2, w3, b3 = params
    x = x.reshape(-1, 64)
    h1 = jnp.maximum(
        jnp.dot(x.astype(dtype), w1.astype(dtype),
                preferred_element_type=jnp.float32) + b1, 0.0)
    h2 = jnp.maximum(
        jnp.dot(h1.astype(dtype), w2.astype(dtype),
                preferred_element_type=jnp.float32) + b2, 0.0)
    return jnp.dot(h2.astype(dtype), w3.astype(dtype),
                   preferred_element_type=jnp.float32) + b3


if __name__ == "__main__":
    key = jax.random.PRNGKey(0)
    kx, kp = jax.random.split(key)
    params = init_params(kp)

    # Small batch of "boards": (B, 8, 8); forward flattens to (-1, 64).
    # B=300 with the auto-balanced tiling gives 2 grid steps of tb=256 and a
    # ragged last tile (exercises multi-tile parallel grid + block overhang).
    B = 300
    x_board = jax.random.normal(kx, (B, 8, 8), jnp.float32)

    out = nnue_forward(x_board, params)
    out = jax.block_until_ready(out)
    ref = nnue_ref(x_board, params)
    assert out.shape == (B, 1), out.shape
    assert jnp.allclose(out, ref, atol=1e-2, rtol=1e-2), "mismatch vs reference"

    # Tiny-batch sanity (single 128-row tile, 127 overhang rows sliced off).
    x_small = jax.random.normal(jax.random.PRNGKey(1), (1, 8, 8), jnp.float32)
    out_s = jax.block_until_ready(nnue_forward(x_small, params))
    ref_s = nnue_ref(x_small, params)
    assert out_s.shape == (1, 1), out_s.shape
    assert jnp.allclose(out_s, ref_s, atol=1e-2, rtol=1e-2), "small-batch mismatch"

    print("KERNEL_OK")
</pallas_src>

<mosaic_0001>
module attributes {stable_mosaic.version = 11 : i64} {
  func.func @nnue_kernel(%arg0: i32, %arg1: memref<256x64xf32, #tpu.memory_space<vmem>>, %arg2: memref<64x128xbf16, #tpu.memory_space<vmem>>, %arg3: memref<1x128xf32, #tpu.memory_space<vmem>>, %arg4: memref<128x128xbf16, #tpu.memory_space<vmem>>, %arg5: memref<1x128xf32, #tpu.memory_space<vmem>>, %arg6: memref<8x128xbf16, #tpu.memory_space<vmem>>, %arg7: memref<1x1xf32, #tpu.memory_space<smem>>, %arg8: memref<1x1x256xf32, #tpu.memory_space<vmem>>) attributes {dimension_semantics = [#tpu.dimension_semantics<parallel>], iteration_bounds = array<i64: 2>, scalar_prefetch = 0 : i64, scratch_operands = 0 : i64, tpu.core_type = #tpu.core_type<tc>, window_params = [{transform_indices = @transform_0, window_bounds = array<i64: 256, 64>}, {pipeline_mode = #tpu.pipeline_mode<synchronous>, transform_indices = @transform_1, window_bounds = array<i64: 64, 128>}, {pipeline_mode = #tpu.pipeline_mode<synchronous>, transform_indices = @transform_2, window_bounds = array<i64: 1, 128>}, {pipeline_mode = #tpu.pipeline_mode<synchronous>, transform_indices = @transform_3, window_bounds = array<i64: 128, 128>}, {pipeline_mode = #tpu.pipeline_mode<synchronous>, transform_indices = @transform_4, window_bounds = array<i64: 1, 128>}, {pipeline_mode = #tpu.pipeline_mode<synchronous>, transform_indices = @transform_5, window_bounds = array<i64: 8, 128>}, {transform_indices = @transform_6, window_bounds = array<i64: 1, 1>}, {transform_indices = @transform_7, window_bounds = array<i64: 1, 1, 256>}]} {
    %c0 = arith.constant 0 : index
    %c0_0 = arith.constant 0 : index
    %0 = vector.load %arg1[%c0, %c0_0] : memref<256x64xf32, #tpu.memory_space<vmem>>, vector<256x64xf32>
    %1 = arith.truncf %0 : vector<256x64xf32> to vector<256x64xbf16>
    %c0_1 = arith.constant 0 : index
    %c0_2 = arith.constant 0 : index
    %2 = vector.load %arg2[%c0_1, %c0_2] : memref<64x128xbf16, #tpu.memory_space<vmem>>, vector<64x128xbf16>
    %cst = arith.constant dense<0.000000e+00> : vector<256x128xf32>
    %3 = tpu.matmul %1, %2, %cst {dimension_numbers = #tpu.dot_dimension_numbers<[1], [0], [0], [1], [0, 0, 1, 1], [], []>} : vector<256x64xbf16>, vector<64x128xbf16>, vector<256x128xf32> -> vector<256x128xf32>
    %c0_3 = arith.constant 0 : index
    %c0_4 = arith.constant 0 : index
    %4 = vector.load %arg3[%c0_3, %c0_4] : memref<1x128xf32, #tpu.memory_space<vmem>>, vector<1x128xf32>
    %5 = vector.broadcast %4 : vector<1x128xf32> to vector<256x128xf32>
    %6 = arith.addf %3, %5 : vector<256x128xf32>
    %7 = arith.truncf %6 : vector<256x128xf32> to vector<256x128xbf16>
    %cst_5 = arith.constant 0.000000e+00 : bf16
    %8 = vector.broadcast %cst_5 : bf16 to vector<256x128xbf16>
    %9 = arith.maximumf %7, %8 : vector<256x128xbf16>
    %c0_6 = arith.constant 0 : index
    %c0_7 = arith.constant 0 : index
    %10 = vector.load %arg4[%c0_6, %c0_7] : memref<128x128xbf16, #tpu.memory_space<vmem>>, vector<128x128xbf16>
    %cst_8 = arith.constant dense<0.000000e+00> : vector<256x128xf32>
    %11 = tpu.matmul %9, %10, %cst_8 {dimension_numbers = #tpu.dot_dimension_numbers<[1], [0], [0], [1], [0, 0, 1, 1], [], []>} : vector<256x128xbf16>, vector<128x128xbf16>, vector<256x128xf32> -> vector<256x128xf32>
    %c0_9 = arith.constant 0 : index
    %c0_10 = arith.constant 0 : index
    %12 = vector.load %arg5[%c0_9, %c0_10] : memref<1x128xf32, #tpu.memory_space<vmem>>, vector<1x128xf32>
    %13 = vector.broadcast %12 : vector<1x128xf32> to vector<256x128xf32>
    %14 = arith.addf %11, %13 : vector<256x128xf32>
    %15 = arith.truncf %14 : vector<256x128xf32> to vector<256x128xbf16>
    %cst_11 = arith.constant 0.000000e+00 : bf16
    %16 = vector.broadcast %cst_11 : bf16 to vector<256x128xbf16>
    %17 = arith.maximumf %15, %16 : vector<256x128xbf16>
    %c0_12 = arith.constant 0 : index
    %c0_13 = arith.constant 0 : index
    %18 = vector.load %arg6[%c0_12, %c0_13] : memref<8x128xbf16, #tpu.memory_space<vmem>>, vector<8x128xbf16>
    %cst_14 = arith.constant dense<0.000000e+00> : vector<8x256xf32>
    %19 = tpu.matmul %18, %17, %cst_14 {dimension_numbers = #tpu.dot_dimension_numbers<[1], [1], [0], [0], [0, 0, 1, 0], [], []>} : vector<8x128xbf16>, vector<256x128xbf16>, vector<8x256xf32> -> vector<8x256xf32>
    %20 = vector.extract_strided_slice %19 {offsets = [0, 0], sizes = [1, 256], strides = [1, 1]} : vector<8x256xf32> to vector<1x256xf32>
    %c0_15 = arith.constant 0 : index
    %c0_16 = arith.constant 0 : index
    %21 = memref.load %arg7[%c0_15, %c0_16] : memref<1x1xf32, #tpu.memory_space<smem>>
    %22 = vector.broadcast %21 : f32 to vector<1x256xf32>
    %23 = arith.addf %20, %22 : vector<1x256xf32>
    %c0_17 = arith.constant 0 : index
    %c0_18 = arith.constant 0 : index
    %c0_19 = arith.constant 0 : index
    %24 = vector.load %arg8[%c0_17, %c0_18, %c0_19] : memref<1x1x256xf32, #tpu.memory_space<vmem>>, vector<1x1x256xf32>
    %25 = vector.shape_cast %24 : vector<1x1x256xf32> to vector<1x256xf32>
    %26 = vector.shape_cast %23 : vector<1x256xf32> to vector<1x1x256xf32>
    tpu.vector_store %arg8[%c0_17, %c0_18, %c0_19], %26 {strides = array<i32>} : memref<1x1x256xf32, #tpu.memory_space<vmem>>, vector<1x1x256xf32>,
    return
  }
  func.func @transform_0(%arg0: i32) -> (i32, i32) {
    %c0_i32 = arith.constant 0 : i32
    %c0_i32_0 = arith.constant 0 : i32
    return %arg0, %c0_i32 : i32, i32
  }
  func.func @transform_1(%arg0: i32) -> (i32, i32) {
    %c0_i32 = arith.constant 0 : i32
    %c0_i32_0 = arith.constant 0 : i32
    %c0_i32_1 = arith.constant 0 : i32
    return %c0_i32, %c0_i32_0 : i32, i32
  }
  func.func @transform_2(%arg0: i32) -> (i32, i32) {
    %c0_i32 = arith.constant 0 : i32
    %c0_i32_0 = arith.constant 0 : i32
    %c0_i32_1 = arith.constant 0 : i32
    return %c0_i32, %c0_i32_0 : i32, i32
  }
  func.func @transform_3(%arg0: i32) -> (i32, i32) {
    %c0_i32 = arith.constant 0 : i32
    %c0_i32_0 = arith.constant 0 : i32
    %c0_i32_1 = arith.constant 0 : i32
    return %c0_i32, %c0_i32_0 : i32, i32
  }
  func.func @transform_4(%arg0: i32) -> (i32, i32) {
    %c0_i32 = arith.constant 0 : i32
    %c0_i32_0 = arith.constant 0 : i32
    %c0_i32_1 = arith.constant 0 : i32
    return %c0_i32, %c0_i32_0 : i32, i32
  }
  func.func @transform_5(%arg0: i32) -> (i32, i32) {
    %c0_i32 = arith.constant 0 : i32
    %c0_i32_0 = arith.constant 0 : i32
    %c0_i32_1 = arith.constant 0 : i32
    return %c0_i32, %c0_i32_0 : i32, i32
  }
  func.func @transform_6(%arg0: i32) -> (i32, i32) {
    %c0_i32 = arith.constant 0 : i32
    %c0_i32_0 = arith.constant 0 : i32
    %c0_i32_1 = arith.constant 0 : i32
    return %c0_i32, %c0_i32_0 : i32, i32
  }
  func.func @transform_7(%arg0: i32) -> (i32, i32, i32) {
    %c0_i32 = arith.constant 0 : i32
    %c0_i32_0 = arith.constant 0 : i32
    %c0_i32_1 = arith.constant 0 : i32
    return %arg0, %c0_i32, %c0_i32_0 : i32, i32, i32
  }
}

</mosaic_0001>

<llo_original>
// kernel: tpu_custom_call.1
$region0: #{tpu_custom_call.1}
  #allocation0 [shape = 'u32[]', space=smem, size = 0x4, offset = 0x4, fixed_abs, tag = 'smem constant byte address 0x4 - core index']
  #allocation1 [shape = 'u32[72,128]{1,0:T(1,128)}', space=vmem, size = 0x9000, scoped, tag = 'internal scratch']
  #allocation2 [shape = 'f32[1,1]{1,0:T(1,128)S(6)}', space=smem, size = 0x200, scoped, tag = 'scoped memory for tpu_custom_call.1']
  %s0 = inlined_call_operand.vmem [shape: f32[300,64], index: 0, kind: input, shape index: {}]
  %s1 = inlined_call_operand.vmem [shape: bf16[64,128], index: 1, kind: input, shape index: {}]
  %s2 = inlined_call_operand.vmem [shape: f32[1,128], index: 2, kind: input, shape index: {}]
  %s3 = inlined_call_operand.vmem [shape: bf16[128,128], index: 3, kind: input, shape index: {}]
  %s4 = inlined_call_operand.vmem [shape: f32[1,128], index: 4, kind: input, shape index: {}]
  %s5 = inlined_call_operand.vmem [shape: bf16[8,128], index: 5, kind: input, shape index: {}]
  %s6 = inlined_call_operand.<no memory space> [shape: f32[1,1], index: 6, kind: input, shape index: {}]
  %s7 = inlined_call_operand.hbm [shape: f32[2,1,256], index: 7, kind: output, shape index: {}]
  %s8 = sld [smem:[#allocation0]]
  $region61: #{tpu_custom_call.1} parent=0
    _
  %s10 = ssub.s32 1, %s8
  %s11 = scalar_select 0, %s10, %s8
  %12 = sst [smem:[#allocation2]] %s6
  $region1: #{tpu_custom_call.1} parent=0
    #allocation3 [shape = 'u8[2048]{0}', space=vmem, size = 0x800, scoped, tag = 'output window, operand 0']
    #allocation4 [shape = 's32[2]{0}', space=sflag, size = 0x8, scoped, tag = 'scoped memory for tpu_custom_call.1']
    %13 = vsyncpa [#allocation4], 0
    %s14 = scalar_lea.sflag [#allocation4], 1
    %15 = vsyncpa %s14, 0
    loop: start=0, step=1, limit=4
    $region2: #{tpu_custom_call.1} parent=1 // loop_pre_header
      _
    $region3: #{tpu_custom_call.1} parent=1 // loop_header
      %s17 = sphi 0, %s21
      %p18 = scmp.ge.s32.totalorder %s17, 4
      %s27 = sphi 0, %s29
      %s30 = sphi 0, %s27
      %s31 = sphi 0, %s30
      %s47 = sphi 0, %s31
      %s51 = sphi 0, %s51
      %s53 = sphi 0, %s51
      %s54 = sphi 0, %s53
      %s68 = sphi 0, %s54
      %s72 = sphi 0, %s72
      %s74 = sphi 0, %s72
      %s75 = sphi 0, %s74
      %s89 = sphi 0, %s75
      %s93 = sphi 0, %s93
      %s95 = sphi 0, %s93
      %s96 = sphi 0, %s95
      %s110 = sphi 0, %s96
      %s114 = sphi 0, %s114
      %s116 = sphi 0, %s114
      %s117 = sphi 0, %s116
      %s131 = sphi 0, %s117
      %s135 = sphi 0, %s135
      %s137 = sphi 0, %s135
      %s138 = sphi 0, %s137
      %s152 = sphi 0, %s138
      %s156 = sphi 0, %s156
      %s158 = sphi 0, %s156
      %s159 = sphi 0, %s158
      %s173 = sphi 0, %s159
      %s179 = sphi 0, %s181
      %s182 = sphi 0, %s179
      %s183 = sphi 0, %s182
      %s199 = sphi 0, %s183
    $region4: #{tpu_custom_call.1} parent=1 // loop_header_branch
      %20 = sbr.rel (%p18) target = $region8
    $region5: #{tpu_custom_call.1} parent=1 // loop_body
      %s22 = ssub.s32 %s17, 1
      %s23 = ssub.s32 %s17, 2
      %s24 = sadd.s32 %s17, 1
      %s25 = ssub.s32 %s17, %s24
      %p26 = scmp.eq.s32.totalorder %s25, 0
      %s28 = sadd.s32 %s27, 1
      %s29 = scalar_select %p26, %s27, %s28
      %p32 = pneg %p26
      %p33 = scmp.eq.s32.totalorder %s17, 1
      %p34 = por %p32, %p33
      %p35 = scmp.ne.s32.totalorder %s27, %s30
      %p36 = scmp.eq.s32.totalorder %s17, 0
      %p37 = por %p35, %p36
      %p38 = scmp.ne.s32.totalorder %s27, %s30
      %p39 = scmp.eq.s32.totalorder %s22, 1
      %p40 = por %p38, %p39
      %p41 = scmp.ne.s32.totalorder %s30, %s31
      %p42 = scmp.eq.s32.totalorder %s22, 0
      %p43 = por %p41, %p42
      %p44 = scmp.ne.s32.totalorder %s30, %s31
      %p45 = scmp.eq.s32.totalorder %s23, 1
      %p46 = por %p44, %p45
      %p48 = scmp.ne.s32.totalorder %s31, %s47
      %p49 = scmp.eq.s32.totalorder %s23, 0
      %p50 = por %p48, %p49
      %s52 = sadd.s32 %s51, 1
      %p55 = scmp.eq.s32.totalorder %s17, 1
      %p56 = scmp.ne.s32.totalorder %s51, %s53
      %p57 = scmp.eq.s32.totalorder %s17, 0
      %p58 = por %p56, %p57
      %p59 = scmp.ne.s32.totalorder %s51, %s53
      %p60 = scmp.eq.s32.totalorder %s22, 1
      %p61 = por %p59, %p60
      %p62 = scmp.ne.s32.totalorder %s53, %s54
      %p63 = scmp.eq.s32.totalorder %s22, 0
      %p64 = por %p62, %p63
      %p65 = scmp.ne.s32.totalorder %s53, %s54
      %p66 = scmp.eq.s32.totalorder %s23, 1
      %p67 = por %p65, %p66
      %p69 = scmp.ne.s32.totalorder %s54, %s68
      %p70 = scmp.eq.s32.totalorder %s23, 0
      %p71 = por %p69, %p70
      %s73 = sadd.s32 %s72, 1
      %p76 = scmp.eq.s32.totalorder %s17, 1
      %p77 = scmp.ne.s32.totalorder %s72, %s74
      %p78 = scmp.eq.s32.totalorder %s17, 0
      %p79 = por %p77, %p78
      %p80 = scmp.ne.s32.totalorder %s72, %s74
      %p81 = scmp.eq.s32.totalorder %s22, 1
      %p82 = por %p80, %p81
      %p83 = scmp.ne.s32.totalorder %s74, %s75
      %p84 = scmp.eq.s32.totalorder %s22, 0
      %p85 = por %p83, %p84
      %p86 = scmp.ne.s32.totalorder %s74, %s75
      %p87 = scmp.eq.s32.totalorder %s23, 1
      %p88 = por %p86, %p87
      %p90 = scmp.ne.s32.totalorder %s75, %s89
      %p91 = scmp.eq.s32.totalorder %s23, 0
      %p92 = por %p90, %p91
      %s94 = sadd.s32 %s93, 1
      %p97 = scmp.eq.s32.totalorder %s17, 1
      %p98 = scmp.ne.s32.totalorder %s93, %s95
      %p99 = scmp.eq.s32.totalorder %s17, 0
      %p100 = por %p98, %p99
      %p101 = scmp.ne.s32.totalorder %s93, %s95
      %p102 = scmp.eq.s32.totalorder %s22, 1
      %p103 = por %p101, %p102
      %p104 = scmp.ne.s32.totalorder %s95, %s96
      %p105 = scmp.eq.s32.totalorder %s22, 0
      %p106 = por %p104, %p105
      %p107 = scmp.ne.s32.totalorder %s95, %s96
      %p108 = scmp.eq.s32.totalorder %s23, 1
      %p109 = por %p107, %p108
      %p111 = scmp.ne.s32.totalorder %s96, %s110
      %p112 = scmp.eq.s32.totalorder %s23, 0
      %p113 = por %p111, %p112
      %s115 = sadd.s32 %s114, 1
      %p118 = scmp.eq.s32.totalorder %s17, 1
      %p119 = scmp.ne.s32.totalorder %s114, %s116
      %p120 = scmp.eq.s32.totalorder %s17, 0
      %p121 = por %p119, %p120
      %p122 = scmp.ne.s32.totalorder %s114, %s116
      %p123 = scmp.eq.s32.totalorder %s22, 1
      %p124 = por %p122, %p123
      %p125 = scmp.ne.s32.totalorder %s116, %s117
      %p126 = scmp.eq.s32.totalorder %s22, 0
      %p127 = por %p125, %p126
      %p128 = scmp.ne.s32.totalorder %s116, %s117
      %p129 = scmp.eq.s32.totalorder %s23, 1
      %p130 = por %p128, %p129
      %p132 = scmp.ne.s32.totalorder %s117, %s131
      %p133 = scmp.eq.s32.totalorder %s23, 0
      %p134 = por %p132, %p133
      %s136 = sadd.s32 %s135, 1
      %p139 = scmp.eq.s32.totalorder %s17, 1
      %p140 = scmp.ne.s32.totalorder %s135, %s137
      %p141 = scmp.eq.s32.totalorder %s17, 0
      %p142 = por %p140, %p141
      %p143 = scmp.ne.s32.totalorder %s135, %s137
      %p144 = scmp.eq.s32.totalorder %s22, 1
      %p145 = por %p143, %p144
      %p146 = scmp.ne.s32.totalorder %s137, %s138
      %p147 = scmp.eq.s32.totalorder %s22, 0
      %p148 = por %p146, %p147
      %p149 = scmp.ne.s32.totalorder %s137, %s138
      %p150 = scmp.eq.s32.totalorder %s23, 1
      %p151 = por %p149, %p150
      %p153 = scmp.ne.s32.totalorder %s138, %s152
      %p154 = scmp.eq.s32.totalorder %s23, 0
      %p155 = por %p153, %p154
      %s157 = sadd.s32 %s156, 1
      %p160 = scmp.eq.s32.totalorder %s17, 1
      %p161 = scmp.ne.s32.totalorder %s156, %s158
      %p162 = scmp.eq.s32.totalorder %s17, 0
      %p163 = por %p161, %p162
      %p164 = scmp.ne.s32.totalorder %s156, %s158
      %p165 = scmp.eq.s32.totalorder %s22, 1
      %p166 = por %p164, %p165
      %p167 = scmp.ne.s32.totalorder %s158, %s159
      %p168 = scmp.eq.s32.totalorder %s22, 0
      %p169 = por %p167, %p168
      %p170 = scmp.ne.s32.totalorder %s158, %s159
      %p171 = scmp.eq.s32.totalorder %s23, 1
      %p172 = por %p170, %p171
      %p174 = scmp.ne.s32.totalorder %s159, %s173
      %p175 = scmp.eq.s32.totalorder %s23, 0
      %p176 = por %p174, %p175
      %s177 = ssub.s32 %s17, %s24
      %p178 = scmp.eq.s32.totalorder %s177, 0
      %s180 = sadd.s32 %s179, 1
      %s181 = scalar_select %p178, %s179, %s180
      %p184 = pneg %p178
      %p185 = scmp.eq.s32.totalorder %s17, 1
      %p186 = por %p184, %p185
      %p187 = scmp.ne.s32.totalorder %s179, %s182
      %p188 = scmp.eq.s32.totalorder %s17, 0
      %p189 = por %p187, %p188
      %p190 = scmp.ne.s32.totalorder %s179, %s182
      %p191 = scmp.eq.s32.totalorder %s22, 1
      %p192 = por %p190, %p191
      %p193 = scmp.ne.s32.totalorder %s182, %s183
      %p194 = scmp.eq.s32.totalorder %s22, 0
      %p195 = por %p193, %p194
      %p196 = scmp.ne.s32.totalorder %s182, %s183
      %p197 = scmp.eq.s32.totalorder %s23, 1
      %p198 = por %p196, %p197
      %p200 = scmp.ne.s32.totalorder %s183, %s199
      %p201 = scmp.eq.s32.totalorder %s23, 0
      %p202 = por %p200, %p201
      %p203 = scmp.le.s32.totalorder 1, %s17
      %p204 = scmp.lt.s32.totalorder %s17, 3
      %p205 = pnand %p203, %p204
      %p206 = pneg %p205
      // Predicated region
      $region9: #{tpu_custom_call.1} parent=5 // pred_check
        _
      $region10: #{tpu_custom_call.1} parent=5 // pred_check_branch
        %208 = sbr.rel (%p205) target = $region12
      $region11: #{tpu_custom_call.1} parent=5 // pred_region
        %s209 = ssub.s32 %s17, 1
        // Predicated region
        $region13: #{tpu_custom_call.1} parent=11 // pred_check
          %p210 = pneg %p64
        $region14: #{tpu_custom_call.1} parent=11 // pred_check_branch
          %212 = sbr.rel (%p210) target = $region16
        $region15: #{tpu_custom_call.1} parent=11 // pred_region
          _
        $region16: #{tpu_custom_call.1} parent=11 // pred_fallthru
          _
        // Predicated region
        $region17: #{tpu_custom_call.1} parent=11 // pred_check
          %p213 = pneg %p85
        $region18: #{tpu_custom_call.1} parent=11 // pred_check_branch
          %215 = sbr.rel (%p213) target = $region20
        $region19: #{tpu_custom_call.1} parent=11 // pred_region
          _
        $region20: #{tpu_custom_call.1} parent=11 // pred_fallthru
          _
        // Predicated region
        $region21: #{tpu_custom_call.1} parent=11 // pred_check
          %p216 = pneg %p106
        $region22: #{tpu_custom_call.1} parent=11 // pred_check_branch
          %218 = sbr.rel (%p216) target = $region24
        $region23: #{tpu_custom_call.1} parent=11 // pred_region
          _
        $region24: #{tpu_custom_call.1} parent=11 // pred_fallthru
          _
        // Predicated region
        $region25: #{tpu_custom_call.1} parent=11 // pred_check
          %p219 = pneg %p127
        $region26: #{tpu_custom_call.1} parent=11 // pred_check_branch
          %221 = sbr.rel (%p219) target = $region28
        $region27: #{tpu_custom_call.1} parent=11 // pred_region
          _
        $region28: #{tpu_custom_call.1} parent=11 // pred_fallthru
          _
        // Predicated region
        $region29: #{tpu_custom_call.1} parent=11 // pred_check
          %p222 = pneg %p148
        $region30: #{tpu_custom_call.1} parent=11 // pred_check_branch
          %224 = sbr.rel (%p222) target = $region32
        $region31: #{tpu_custom_call.1} parent=11 // pred_region
          _
        $region32: #{tpu_custom_call.1} parent=11 // pred_fallthru
          _
        // Predicated region
        $region33: #{tpu_custom_call.1} parent=11 // pred_check
          %p225 = pneg %p169
        $region34: #{tpu_custom_call.1} parent=11 // pred_check_branch
          %227 = sbr.rel (%p225) target = $region36
        $region35: #{tpu_custom_call.1} parent=11 // pred_region
          _
        $region36: #{tpu_custom_call.1} parent=11 // pred_fallthru
          _
      $region12: #{tpu_custom_call.1} parent=5 // pred_fallthru
        _
      %p228 = scmp.lt.s32.totalorder %s17, 2
      // Predicated region
      $region37: #{tpu_custom_call.1} parent=5 // pred_check
        %p229 = pneg %p228
      $region38: #{tpu_custom_call.1} parent=5 // pred_check_branch
        %231 = sbr.rel (%p229) target = $region40
      $region39: #{tpu_custom_call.1} parent=5 // pred_region
        // Predicated region
        $region41: #{tpu_custom_call.1} parent=39 // pred_check
          %p232 = pneg %p37
        $region42: #{tpu_custom_call.1} parent=39 // pred_check_branch
          %234 = sbr.rel (%p232) target = $region44
        $region43: #{tpu_custom_call.1} parent=39 // pred_region
          %s235 = smul.u32 32, %s17
          %s236 = ssub.s32 38, %s235
          %p237 = scmp.lt.s32.totalorder %s236, 32
          %s238 = scalar_select %p237, %s236, 32
          %s239 = smul.u32 8, %s238
          %p240 = scmp.lt.s32.totalorder %s235, 37
          %s241 = scalar_select %p240, %s235, 37
          %s242 = smul.addr %s241, 8
          %s243 = scalar_lea.vmem %s0, %s242
          %s244 = smul.u32 32, %s17
          %s245 = ssub.s32 38, %s244
          %p246 = scmp.lt.s32.totalorder %s245, 32
          %s247 = scalar_select %p246, %s245, 32
          %s248 = smul.u32 8, %s247
        $region44: #{tpu_custom_call.1} parent=39 // pred_fallthru
          _
      $region40: #{tpu_custom_call.1} parent=5 // pred_fallthru
        _
      %p249 = scmp.le.s32.totalorder 1, %s17
      %p250 = scmp.lt.s32.totalorder %s17, 3
      %p251 = pnand %p249, %p250
      %p252 = pneg %p251
      // Predicated region
      $region45: #{tpu_custom_call.1} parent=5 // pred_check
        _
      $region46: #{tpu_custom_call.1} parent=5 // pred_check_branch
        %254 = sbr.rel (%p251) target = $region48
      $region47: #{tpu_custom_call.1} parent=5 // pred_region
        %s255 = ssub.s32 %s17, 1
        %s256 = smul.u32 32, %s22
        %s257 = ssub.s32 38, %s256
        %p258 = scmp.lt.s32.totalorder %s257, 32
        %s259 = scalar_select %p258, %s257, 32
        %s260 = smul.u32 8, %s259
        %p261 = scmp.lt.s32.totalorder %s256, 37
        %s262 = scalar_select %p261, %s256, 37
        %s263 = smul.addr %s262, 8
        %s264 = scalar_lea.vmem %s0, %s263
        %p265 = pneg %p43
        %p266 = pneg %p40
        %p267 = pneg %p64
        %p268 = pneg %p61
        %p269 = pneg %p85
        %p270 = pneg %p82
        %p271 = pneg %p106
        %p272 = pneg %p103
        %p273 = pneg %p127
        %p274 = pneg %p124
        %p275 = pneg %p148
        %p276 = pneg %p145
        %p277 = pneg %p169
        %p278 = pneg %p166
        %p279 = pneg %p195
        %p280 = pneg %p192
        %s281 = sand.u32 %s182, 1
        %s282 = scalar_lea.sflag [#allocation4], %s281
        %s283 = sand.u32 %s182, 1
        %s284 = smul.addr %s283, 2
        %s285 = scalar_lea.vmem [#allocation3], %s284
        %s286 = smul.u32 32, %s22
        %s287 = ssub.s32 38, %s286
        %p288 = scmp.lt.s32.totalorder %s287, 32
        %s289 = scalar_select %p288, %s287, 32
        %s290 = smul.u32 8, %s289
        %p291 = scmp.lt.s32.totalorder %s286, 37
        %s292 = scalar_select %p291, %s286, 37
        %s293 = smul.addr %s292, 8
        %s294 = scalar_lea.vmem %s0, %s293
        %s295 = smul.u32 32, %s22
        %s296 = ssub.s32 38, %s295
        %p297 = scmp.lt.s32.totalorder %s296, 32
        %s298 = scalar_select %p297, %s296, 32
        %s299 = smul.u32 8, %s298
        %v301 = vld [vmem:[%s294] sm:$0xff]
        %v302 = vld [vmem:[%s294 + $0x8] sm:$0xff]
        %v303 = vld [vmem:[%s294 + $0x10] sm:$0xff]
        %v304 = vld [vmem:[%s294 + $0x18] sm:$0xff]
        %v305 = vld [vmem:[%s294 + $0x20] sm:$0xff]
        %v306 = vld [vmem:[%s294 + $0x28] sm:$0xff]
        %v307 = vld [vmem:[%s294 + $0x30] sm:$0xff]
        %v308 = vld [vmem:[%s294 + $0x38] sm:$0xff]
        %v309 = vld [vmem:[%s294 + $0x40] sm:$0xff]
        %v310 = vld [vmem:[%s294 + $0x48] sm:$0xff]
        %v311 = vld [vmem:[%s294 + $0x50] sm:$0xff]
        %v312 = vld [vmem:[%s294 + $0x58] sm:$0xff]
        %v313 = vld [vmem:[%s294 + $0x60] sm:$0xff]
        %v314 = vld [vmem:[%s294 + $0x68] sm:$0xff]
        %v315 = vld [vmem:[%s294 + $0x70] sm:$0xff]
        %v316 = vld [vmem:[%s294 + $0x78] sm:$0xff]
        %v317 = vld [vmem:[%s294 + $0x80] sm:$0xff]
        %v318 = vld [vmem:[%s294 + $0x88] sm:$0xff]
        %v319 = vld [vmem:[%s294 + $0x90] sm:$0xff]
        %v320 = vld [vmem:[%s294 + $0x98] sm:$0xff]
        %v321 = vld [vmem:[%s294 + $0xa0] sm:$0xff]
        %v322 = vld [vmem:[%s294 + $0xa8] sm:$0xff]
        %v323 = vld [vmem:[%s294 + $0xb0] sm:$0xff]
        %v324 = vld [vmem:[%s294 + $0xb8] sm:$0xff]
        %v325 = vld [vmem:[%s294 + $0xc0] sm:$0xff]
        %v326 = vld [vmem:[%s294 + $0xc8] sm:$0xff]
        %v327 = vld [vmem:[%s294 + $0xd0] sm:$0xff]
        %v328 = vld [vmem:[%s294 + $0xd8] sm:$0xff]
        %v329 = vld [vmem:[%s294 + $0xe0] sm:$0xff]
        %v330 = vld [vmem:[%s294 + $0xe8] sm:$0xff]
        %v331 = vld [vmem:[%s294 + $0xf0] sm:$0xff]
        %v332 = vld [vmem:[%s294 + $0xf8] sm:$0xff]
        %v333 = vpack.c.bf16 %v302, %v301
        %v334 = vpack.c.bf16 %v304, %v303
        %v335 = vpack.c.bf16 %v306, %v305
        %v336 = vpack.c.bf16 %v308, %v307
        %v337 = vpack.c.bf16 %v310, %v309
        %v338 = vpack.c.bf16 %v312, %v311
        %v339 = vpack.c.bf16 %v314, %v313
        %v340 = vpack.c.bf16 %v316, %v315
        %v341 = vpack.c.bf16 %v318, %v317
        %v342 = vpack.c.bf16 %v320, %v319
        %v343 = vpack.c.bf16 %v322, %v321
        %v344 = vpack.c.bf16 %v324, %v323
        %v345 = vpack.c.bf16 %v326, %v325
        %v346 = vpack.c.bf16 %v328, %v327
        %v347 = vpack.c.bf16 %v330, %v329
        %v348 = vpack.c.bf16 %v332, %v331
        %v349 = vld [vmem:[%s1] sm:$0xf]
        %v350 = vld [vmem:[%s1 + $0x4] sm:$0xf]
        %v351 = vld [vmem:[%s1 + $0x8] sm:$0xf]
        %v352 = vld [vmem:[%s1 + $0xc] sm:$0xf]
        %v353 = vld [vmem:[%s1 + $0x10] sm:$0xf]
        %v354 = vld [vmem:[%s1 + $0x14] sm:$0xf]
        %v355 = vld [vmem:[%s1 + $0x18] sm:$0xf]
        %v356 = vld [vmem:[%s1 + $0x1c] sm:$0xf]
        %v357 = vld [vmem:[%s2] sm:$0x1]
        %v359 = vperm.slane %v357, 0
        %v369 = vunpack.c.l.b16 %v349
        %v370 = vunpack.c.l.b16 %v350
        %v371 = vunpack.c.l.b16 %v351
        %v372 = vunpack.c.l.b16 %v352
        %v373 = vunpack.c.l.b16 %v353
        %v374 = vunpack.c.l.b16 %v354
        %v375 = vunpack.c.l.b16 %v355
        %v376 = vunpack.c.l.b16 %v356
        %v377 = vpack.c.b16 %v370, %v369
        %v378 = vpack.c.b16 %v372, %v371
        %v379 = vpack.c.b16 %v374, %v373
        %v380 = vpack.c.b16 %v376, %v375
        %vm385 = vcmask 523264
        %v387 = vsel %vm385, %v333, 0
        %v390 = vsel %vm385, %v334, 0
        %v393 = vsel %vm385, %v335, 0
        %v396 = vsel %vm385, %v336, 0
        %v399 = vsel %vm385, %v337, 0
        %v402 = vsel %vm385, %v338, 0
        %v405 = vsel %vm385, %v339, 0
        %v408 = vsel %vm385, %v340, 0
        %v411 = vsel %vm385, %v341, 0
        %v414 = vsel %vm385, %v342, 0
        %v417 = vsel %vm385, %v343, 0
        %v420 = vsel %vm385, %v344, 0
        %v423 = vsel %vm385, %v345, 0
        %v426 = vsel %vm385, %v346, 0
        %v429 = vsel %vm385, %v347, 0
        %v432 = vsel %vm385, %v348, 0
        %434 = vmatpush.bf16.msra.mxu0 0
        %435 = vmatpush.bf16.msra.mxu0 0
        %436 = vmatpush.bf16.msra.mxu0 0
        %437 = vmatpush.bf16.msra.mxu0 0
        %438 = vmatpush.bf16.msra.mxu0 %v380
        %439 = vmatpush.bf16.msra.mxu0 %v379
        %440 = vmatpush.bf16.msra.mxu0 %v378
        %441 = vmatpush.bf16.msra.mxu0 %v377
        %442 = vmatmul.bf16.gmra.mxu0 %v387
        %v443 = vpop.f32.mrf.mxu0
        %v444 = vadd.f32 %v359, %v443
        %v445 = vpop.f32.mrf.mxu0
        %v446 = vadd.f32 %v359, %v445
        %447 = vmatmul.bf16.gmra.mxu0 %v390
        %v448 = vpop.f32.mrf.mxu0
        %v449 = vadd.f32 %v359, %v448
        %v450 = vpop.f32.mrf.mxu0
        %v451 = vadd.f32 %v359, %v450
        %452 = vmatmul.bf16.gmra.mxu0 %v393
        %v453 = vpop.f32.mrf.mxu0
        %v454 = vadd.f32 %v359, %v453
        %v455 = vpop.f32.mrf.mxu0
        %v456 = vadd.f32 %v359, %v455
        %457 = vmatmul.bf16.gmra.mxu0 %v396
        %v458 = vpop.f32.mrf.mxu0
        %v459 = vadd.f32 %v359, %v458
        %v460 = vpop.f32.mrf.mxu0
        %v461 = vadd.f32 %v359, %v460
        %462 = vmatmul.bf16.gmra.mxu0 %v399
        %v463 = vpop.f32.mrf.mxu0
        %v464 = vadd.f32 %v359, %v463
        %v465 = vpop.f32.mrf.mxu0
        %v466 = vadd.f32 %v359, %v465
        %467 = vmatmul.bf16.gmra.mxu0 %v402
        %v468 = vpop.f32.mrf.mxu0
        %v469 = vadd.f32 %v359, %v468
        %v470 = vpop.f32.mrf.mxu0
        %v471 = vadd.f32 %v359, %v470
        %472 = vmatmul.bf16.gmra.mxu0 %v405
        %v473 = vpop.f32.mrf.mxu0
        %v474 = vadd.f32 %v359, %v473
        %v475 = vpop.f32.mrf.mxu0
        %v476 = vadd.f32 %v359, %v475
        %477 = vmatmul.bf16.gmra.mxu0 %v408
        %v478 = vpop.f32.mrf.mxu0
        %v479 = vadd.f32 %v359, %v478
        %v480 = vpop.f32.mrf.mxu0
        %v481 = vadd.f32 %v359, %v480
        %482 = vmatmul.bf16.gmra.mxu0 %v411
        %v483 = vpop.f32.mrf.mxu0
        %v484 = vadd.f32 %v359, %v483
        %v485 = vpop.f32.mrf.mxu0
        %v486 = vadd.f32 %v359, %v485
        %487 = vmatmul.bf16.gmra.mxu0 %v414
        %v488 = vpop.f32.mrf.mxu0
        %v489 = vadd.f32 %v359, %v488
        %v490 = vpop.f32.mrf.mxu0
        %v491 = vadd.f32 %v359, %v490
        %492 = vmatmul.bf16.gmra.mxu0 %v417
        %v493 = vpop.f32.mrf.mxu0
        %v494 = vadd.f32 %v359, %v493
        %v495 = vpop.f32.mrf.mxu0
        %v496 = vadd.f32 %v359, %v495
        %497 = vmatmul.bf16.gmra.mxu0 %v420
        %v498 = vpop.f32.mrf.mxu0
        %v499 = vadd.f32 %v359, %v498
        %v500 = vpop.f32.mrf.mxu0
        %v501 = vadd.f32 %v359, %v500
        %502 = vmatmul.bf16.gmra.mxu0 %v423
        %v503 = vpop.f32.mrf.mxu0
        %v504 = vadd.f32 %v359, %v503
        %v505 = vpop.f32.mrf.mxu0
        %v506 = vadd.f32 %v359, %v505
        %507 = vmatmul.bf16.gmra.mxu0 %v426
        %v508 = vpop.f32.mrf.mxu0
        %v509 = vadd.f32 %v359, %v508
        %v510 = vpop.f32.mrf.mxu0
        %v511 = vadd.f32 %v359, %v510
        %512 = vmatmul.bf16.gmra.mxu0 %v429
        %v513 = vpop.f32.mrf.mxu0
        %v514 = vadd.f32 %v359, %v513
        %v515 = vpop.f32.mrf.mxu0
        %v516 = vadd.f32 %v359, %v515
        %517 = vmatmul.bf16.gmra.mxu0 %v432
        %v518 = vpop.f32.mrf.mxu0
        %v519 = vadd.f32 %v359, %v518
        %v520 = vpop.f32.mrf.mxu0
        %v521 = vadd.f32 %v359, %v520
        %522 = vdwg.mxu0
        %v523 = vpack.c.bf16 %v444, %v444
        %v524 = vpack.c.bf16 %v446, %v446
        %v525 = vpack.c.bf16 %v449, %v449
        %v526 = vpack.c.bf16 %v451, %v451
        %v527 = vpack.c.bf16 %v454, %v454
        %v528 = vpack.c.bf16 %v456, %v456
        %v529 = vpack.c.bf16 %v459, %v459
        %v530 = vpack.c.bf16 %v461, %v461
        %v531 = vpack.c.bf16 %v464, %v464
        %v532 = vpack.c.bf16 %v466, %v466
        %v533 = vpack.c.bf16 %v469, %v469
        %v534 = vpack.c.bf16 %v471, %v471
        %v535 = vpack.c.bf16 %v474, %v474
        %v536 = vpack.c.bf16 %v476, %v476
        %v537 = vpack.c.bf16 %v479, %v479
        %v538 = vpack.c.bf16 %v481, %v481
        %v539 = vpack.c.bf16 %v484, %v484
        %v540 = vpack.c.bf16 %v486, %v486
        %v541 = vpack.c.bf16 %v489, %v489
        %v542 = vpack.c.bf16 %v491, %v491
        %v543 = vpack.c.bf16 %v494, %v494
        %v544 = vpack.c.bf16 %v496, %v496
        %v545 = vpack.c.bf16 %v499, %v499
        %v546 = vpack.c.bf16 %v501, %v501
        %v547 = vpack.c.bf16 %v504, %v504
        %v548 = vpack.c.bf16 %v506, %v506
        %v549 = vpack.c.bf16 %v509, %v509
        %v550 = vpack.c.bf16 %v511, %v511
        %v551 = vpack.c.bf16 %v514, %v514
        %v552 = vpack.c.bf16 %v516, %v516
        %v553 = vpack.c.bf16 %v519, %v519
        %v554 = vpack.c.bf16 %v521, %v521
        %v555 = vunpack.c.l.bf16 %v523
        %v556 = vunpack.c.l.bf16 %v524
        %v557 = vunpack.c.l.bf16 %v525
        %v558 = vunpack.c.l.bf16 %v526
        %v559 = vunpack.c.l.bf16 %v527
        %v560 = vunpack.c.l.bf16 %v528
        %v561 = vunpack.c.l.bf16 %v529
        %v562 = vunpack.c.l.bf16 %v530
        %v563 = vunpack.c.l.bf16 %v531
        %v564 = vunpack.c.l.bf16 %v532
        %v565 = vunpack.c.l.bf16 %v533
        %v566 = vunpack.c.l.bf16 %v534
        %v567 = vunpack.c.l.bf16 %v535
        %v568 = vunpack.c.l.bf16 %v536
        %v569 = vunpack.c.l.bf16 %v537
        %v570 = vunpack.c.l.bf16 %v538
        %v571 = vunpack.c.l.bf16 %v539
        %v572 = vunpack.c.l.bf16 %v540
        %v573 = vunpack.c.l.bf16 %v541
        %v574 = vunpack.c.l.bf16 %v542
        %v575 = vunpack.c.l.bf16 %v543
        %v576 = vunpack.c.l.bf16 %v544
        %v577 = vunpack.c.l.bf16 %v545
        %v578 = vunpack.c.l.bf16 %v546
        %v579 = vunpack.c.l.bf16 %v547
        %v580 = vunpack.c.l.bf16 %v548
        %v581 = vunpack.c.l.bf16 %v549
        %v582 = vunpack.c.l.bf16 %v550
        %v583 = vunpack.c.l.bf16 %v551
        %v584 = vunpack.c.l.bf16 %v552
        %v585 = vunpack.c.l.bf16 %v553
        %v586 = vunpack.c.l.bf16 %v554
        %v587 = vmax.f32 %v555, 0.0
        %v588 = vmax.f32 %v556, 0.0
        %v589 = vmax.f32 %v557, 0.0
        %v590 = vmax.f32 %v558, 0.0
        %v591 = vmax.f32 %v559, 0.0
        %v592 = vmax.f32 %v560, 0.0
        %v593 = vmax.f32 %v561, 0.0
        %v594 = vmax.f32 %v562, 0.0
        %v595 = vmax.f32 %v563, 0.0
        %v596 = vmax.f32 %v564, 0.0
        %v597 = vmax.f32 %v565, 0.0
        %v598 = vmax.f32 %v566, 0.0
        %v599 = vmax.f32 %v567, 0.0
        %v600 = vmax.f32 %v568, 0.0
        %v601 = vmax.f32 %v569, 0.0
        %v602 = vmax.f32 %v570, 0.0
        %v603 = vmax.f32 %v571, 0.0
        %v604 = vmax.f32 %v572, 0.0
        %v605 = vmax.f32 %v573, 0.0
        %v606 = vmax.f32 %v574, 0.0
        %v607 = vmax.f32 %v575, 0.0
        %v608 = vmax.f32 %v576, 0.0
        %v609 = vmax.f32 %v577, 0.0
        %v610 = vmax.f32 %v578, 0.0
        %v611 = vmax.f32 %v579, 0.0
        %v612 = vmax.f32 %v580, 0.0
        %v613 = vmax.f32 %v581, 0.0
        %v614 = vmax.f32 %v582, 0.0
        %v615 = vmax.f32 %v583, 0.0
        %v616 = vmax.f32 %v584, 0.0
        %v617 = vmax.f32 %v585, 0.0
        %v618 = vmax.f32 %v586, 0.0
        %v619 = vpack.c.bf16 %v588, %v587
        %v620 = vpack.c.bf16 %v590, %v589
        %v621 = vpack.c.bf16 %v592, %v591
        %v622 = vpack.c.bf16 %v594, %v593
        %v623 = vpack.c.bf16 %v596, %v595
        %v624 = vpack.c.bf16 %v598, %v597
        %v625 = vpack.c.bf16 %v600, %v599
        %v626 = vpack.c.bf16 %v602, %v601
        %v627 = vpack.c.bf16 %v604, %v603
        %v628 = vpack.c.bf16 %v606, %v605
        %v629 = vpack.c.bf16 %v608, %v607
        %v630 = vpack.c.bf16 %v610, %v609
        %v631 = vpack.c.bf16 %v612, %v611
        %v632 = vpack.c.bf16 %v614, %v613
        %v633 = vpack.c.bf16 %v616, %v615
        %v634 = vpack.c.bf16 %v618, %v617
        %v635 = vld [vmem:[%s3] sm:$0xf]
        %v636 = vld [vmem:[%s3 + $0x4] sm:$0xf]
        %v637 = vld [vmem:[%s3 + $0x8] sm:$0xf]
        %v638 = vld [vmem:[%s3 + $0xc] sm:$0xf]
        %v639 = vld [vmem:[%s3 + $0x10] sm:$0xf]
        %v640 = vld [vmem:[%s3 + $0x14] sm:$0xf]
        %v641 = vld [vmem:[%s3 + $0x18] sm:$0xf]
        %v642 = vld [vmem:[%s3 + $0x1c] sm:$0xf]
        %v643 = vld [vmem:[%s3 + $0x20] sm:$0xf]
        %v644 = vld [vmem:[%s3 + $0x24] sm:$0xf]
        %v645 = vld [vmem:[%s3 + $0x28] sm:$0xf]
        %v646 = vld [vmem:[%s3 + $0x2c] sm:$0xf]
        %v647 = vld [vmem:[%s3 + $0x30] sm:$0xf]
        %v648 = vld [vmem:[%s3 + $0x34] sm:$0xf]
        %v649 = vld [vmem:[%s3 + $0x38] sm:$0xf]
        %v650 = vld [vmem:[%s3 + $0x3c] sm:$0xf]
        %v651 = vld [vmem:[%s4] sm:$0x1]
        %v653 = vperm.slane %v651, 0
        %v671 = vunpack.c.l.b16 %v635
        %v672 = vunpack.c.l.b16 %v636
        %v673 = vunpack.c.l.b16 %v637
        %v674 = vunpack.c.l.b16 %v638
        %v675 = vunpack.c.l.b16 %v639
        %v676 = vunpack.c.l.b16 %v640
        %v677 = vunpack.c.l.b16 %v641
        %v678 = vunpack.c.l.b16 %v642
        %v679 = vunpack.c.l.b16 %v643
        %v680 = vunpack.c.l.b16 %v644
        %v681 = vunpack.c.l.b16 %v645
        %v682 = vunpack.c.l.b16 %v646
        %v683 = vunpack.c.l.b16 %v647
        %v684 = vunpack.c.l.b16 %v648
        %v685 = vunpack.c.l.b16 %v649
        %v686 = vunpack.c.l.b16 %v650
        %v687 = vpack.c.b16 %v672, %v671
        %v688 = vpack.c.b16 %v674, %v673
        %v689 = vpack.c.b16 %v676, %v675
        %v690 = vpack.c.b16 %v678, %v677
        %v691 = vpack.c.b16 %v680, %v679
        %v692 = vpack.c.b16 %v682, %v681
        %v693 = vpack.c.b16 %v684, %v683
        %v694 = vpack.c.b16 %v686, %v685
        %703 = vmatpush.bf16.msra.mxu0 %v694
        %704 = vmatpush.bf16.msra.mxu0 %v693
        %705 = vmatpush.bf16.msra.mxu0 %v692
        %706 = vmatpush.bf16.msra.mxu0 %v691
        %707 = vmatpush.bf16.msra.mxu0 %v690
        %708 = vmatpush.bf16.msra.mxu0 %v689
        %709 = vmatpush.bf16.msra.mxu0 %v688
        %710 = vmatpush.bf16.msra.mxu0 %v687
        %711 = vmatmul.bf16.gmra.mxu0 %v619
        %v712 = vpop.f32.mrf.mxu0
        %v713 = vadd.f32 %v653, %v712
        %v714 = vpop.f32.mrf.mxu0
        %v715 = vadd.f32 %v653, %v714
        %716 = vmatmul.bf16.gmra.mxu0 %v620
        %v717 = vpop.f32.mrf.mxu0
        %v718 = vadd.f32 %v653, %v717
        %v719 = vpop.f32.mrf.mxu0
        %v720 = vadd.f32 %v653, %v719
        %721 = vmatmul.bf16.gmra.mxu0 %v621
        %v722 = vpop.f32.mrf.mxu0
        %v723 = vadd.f32 %v653, %v722
        %v724 = vpop.f32.mrf.mxu0
        %v725 = vadd.f32 %v653, %v724
        %726 = vmatmul.bf16.gmra.mxu0 %v622
        %v727 = vpop.f32.mrf.mxu0
        %v728 = vadd.f32 %v653, %v727
        %v729 = vpop.f32.mrf.mxu0
        %v730 = vadd.f32 %v653, %v729
        %731 = vmatmul.bf16.gmra.mxu0 %v623
        %v732 = vpop.f32.mrf.mxu0
        %v733 = vadd.f32 %v653, %v732
        %v734 = vpop.f32.mrf.mxu0
        %v735 = vadd.f32 %v653, %v734
        %736 = vmatmul.bf16.gmra.mxu0 %v624
        %v737 = vpop.f32.mrf.mxu0
        %v738 = vadd.f32 %v653, %v737
        %v739 = vpop.f32.mrf.mxu0
        %v740 = vadd.f32 %v653, %v739
        %741 = vmatmul.bf16.gmra.mxu0 %v625
        %v742 = vpop.f32.mrf.mxu0
        %v743 = vadd.f32 %v653, %v742
        %v744 = vpop.f32.mrf.mxu0
        %v745 = vadd.f32 %v653, %v744
        %746 = vmatmul.bf16.gmra.mxu0 %v626
        %v747 = vpop.f32.mrf.mxu0
        %v748 = vadd.f32 %v653, %v747
        %v749 = vpop.f32.mrf.mxu0
        %v750 = vadd.f32 %v653, %v749
        %751 = vmatmul.bf16.gmra.mxu0 %v627
        %v752 = vpop.f32.mrf.mxu0
        %v753 = vadd.f32 %v653, %v752
        %v754 = vpop.f32.mrf.mxu0
        %v755 = vadd.f32 %v653, %v754
        %756 = vmatmul.bf16.gmra.mxu0 %v628
        %v757 = vpop.f32.mrf.mxu0
        %v758 = vadd.f32 %v653, %v757
        %v759 = vpop.f32.mrf.mxu0
        %v760 = vadd.f32 %v653, %v759
        %761 = vmatmul.bf16.gmra.mxu0 %v629
        %v762 = vpop.f32.mrf.mxu0
        %v763 = vadd.f32 %v653, %v762
        %v764 = vpop.f32.mrf.mxu0
        %v765 = vadd.f32 %v653, %v764
        %766 = vmatmul.bf16.gmra.mxu0 %v630
        %v767 = vpop.f32.mrf.mxu0
        %v768 = vadd.f32 %v653, %v767
        %v769 = vpop.f32.mrf.mxu0
        %v770 = vadd.f32 %v653, %v769
        %771 = vmatmul.bf16.gmra.mxu0 %v631
        %v772 = vpop.f32.mrf.mxu0
        %v773 = vadd.f32 %v653, %v772
        %v774 = vpop.f32.mrf.mxu0
        %v775 = vadd.f32 %v653, %v774
        %776 = vmatmul.bf16.gmra.mxu0 %v632
        %v777 = vpop.f32.mrf.mxu0
        %v778 = vadd.f32 %v653, %v777
        %v779 = vpop.f32.mrf.mxu0
        %v780 = vadd.f32 %v653, %v779
        %781 = vmatmul.bf16.gmra.mxu0 %v633
        %v782 = vpop.f32.mrf.mxu0
        %v783 = vadd.f32 %v653, %v782
        %v784 = vpop.f32.mrf.mxu0
        %v785 = vadd.f32 %v653, %v784
        %786 = vmatmul.bf16.gmra.mxu0 %v634
        %v787 = vpop.f32.mrf.mxu0
        %v788 = vadd.f32 %v653, %v787
        %v789 = vpop.f32.mrf.mxu0
        %v790 = vadd.f32 %v653, %v789
        %791 = vdwg.mxu0
        %v792 = vpack.c.bf16 %v713, %v713
        %v793 = vpack.c.bf16 %v715, %v715
        %v794 = vpack.c.bf16 %v718, %v718
        %v795 = vpack.c.bf16 %v720, %v720
        %v796 = vpack.c.bf16 %v723, %v723
        %v797 = vpack.c.bf16 %v725, %v725
        %v798 = vpack.c.bf16 %v728, %v728
        %v799 = vpack.c.bf16 %v730, %v730
        %v800 = vpack.c.bf16 %v733, %v733
        %v801 = vpack.c.bf16 %v735, %v735
        %v802 = vpack.c.bf16 %v738, %v738
        %v803 = vpack.c.bf16 %v740, %v740
        %v804 = vpack.c.bf16 %v743, %v743
        %v805 = vpack.c.bf16 %v745, %v745
        %v806 = vpack.c.bf16 %v748, %v748
        %v807 = vpack.c.bf16 %v750, %v750
        %v808 = vpack.c.bf16 %v753, %v753
        %v809 = vpack.c.bf16 %v755, %v755
        %v810 = vpack.c.bf16 %v758, %v758
        %v811 = vpack.c.bf16 %v760, %v760
        %v812 = vpack.c.bf16 %v763, %v763
        %v813 = vpack.c.bf16 %v765, %v765
        %v814 = vpack.c.bf16 %v768, %v768
        %v815 = vpack.c.bf16 %v770, %v770
        %v816 = vpack.c.bf16 %v773, %v773
        %v817 = vpack.c.bf16 %v775, %v775
        %v818 = vpack.c.bf16 %v778, %v778
        %v819 = vpack.c.bf16 %v780, %v780
        %v820 = vpack.c.bf16 %v783, %v783
        %v821 = vpack.c.bf16 %v785, %v785
        %v822 = vpack.c.bf16 %v788, %v788
        %v823 = vpack.c.bf16 %v790, %v790
        %v824 = vunpack.c.l.bf16 %v792
        %v825 = vunpack.c.l.bf16 %v793
        %v826 = vunpack.c.l.bf16 %v794
        %v827 = vunpack.c.l.bf16 %v795
        %v828 = vunpack.c.l.bf16 %v796
        %v829 = vunpack.c.l.bf16 %v797
        %v830 = vunpack.c.l.bf16 %v798
        %v831 = vunpack.c.l.bf16 %v799
        %v832 = vunpack.c.l.bf16 %v800
        %v833 = vunpack.c.l.bf16 %v801
        %v834 = vunpack.c.l.bf16 %v802
        %v835 = vunpack.c.l.bf16 %v803
        %v836 = vunpack.c.l.bf16 %v804
        %v837 = vunpack.c.l.bf16 %v805
        %v838 = vunpack.c.l.bf16 %v806
        %v839 = vunpack.c.l.bf16 %v807
        %v840 = vunpack.c.l.bf16 %v808
        %v841 = vunpack.c.l.bf16 %v809
        %v842 = vunpack.c.l.bf16 %v810
        %v843 = vunpack.c.l.bf16 %v811
        %v844 = vunpack.c.l.bf16 %v812
        %v845 = vunpack.c.l.bf16 %v813
        %v846 = vunpack.c.l.bf16 %v814
        %v847 = vunpack.c.l.bf16 %v815
        %v848 = vunpack.c.l.bf16 %v816
        %v849 = vunpack.c.l.bf16 %v817
        %v850 = vunpack.c.l.bf16 %v818
        %v851 = vunpack.c.l.bf16 %v819
        %v852 = vunpack.c.l.bf16 %v820
        %v853 = vunpack.c.l.bf16 %v821
        %v854 = vunpack.c.l.bf16 %v822
        %v855 = vunpack.c.l.bf16 %v823
        %v856 = vmax.f32 %v824, 0.0
        %v857 = vmax.f32 %v825, 0.0
        %v858 = vmax.f32 %v826, 0.0
        %v859 = vmax.f32 %v827, 0.0
        %v860 = vmax.f32 %v828, 0.0
        %v861 = vmax.f32 %v829, 0.0
        %v862 = vmax.f32 %v830, 0.0
        %v863 = vmax.f32 %v831, 0.0
        %v864 = vmax.f32 %v832, 0.0
        %v865 = vmax.f32 %v833, 0.0
        %v866 = vmax.f32 %v834, 0.0
        %v867 = vmax.f32 %v835, 0.0
        %v868 = vmax.f32 %v836, 0.0
        %v869 = vmax.f32 %v837, 0.0
        %v870 = vmax.f32 %v838, 0.0
        %v871 = vmax.f32 %v839, 0.0
        %v872 = vmax.f32 %v840, 0.0
        %v873 = vmax.f32 %v841, 0.0
        %v874 = vmax.f32 %v842, 0.0
        %v875 = vmax.f32 %v843, 0.0
        %v876 = vmax.f32 %v844, 0.0
        %v877 = vmax.f32 %v845, 0.0
        %v878 = vmax.f32 %v846, 0.0
        %v879 = vmax.f32 %v847, 0.0
        %v880 = vmax.f32 %v848, 0.0
        %v881 = vmax.f32 %v849, 0.0
        %v882 = vmax.f32 %v850, 0.0
        %v883 = vmax.f32 %v851, 0.0
        %v884 = vmax.f32 %v852, 0.0
        %v885 = vmax.f32 %v853, 0.0
        %v886 = vmax.f32 %v854, 0.0
        %v887 = vmax.f32 %v855, 0.0
        %v888 = vpack.c.bf16 %v857, %v856
        %v889 = vpack.c.bf16 %v859, %v858
        %v890 = vpack.c.bf16 %v861, %v860
        %v891 = vpack.c.bf16 %v863, %v862
        %v892 = vpack.c.bf16 %v865, %v864
        %v893 = vpack.c.bf16 %v867, %v866
        %v894 = vpack.c.bf16 %v869, %v868
        %v895 = vpack.c.bf16 %v871, %v870
        %v896 = vpack.c.bf16 %v873, %v872
        %v897 = vpack.c.bf16 %v875, %v874
        %v898 = vpack.c.bf16 %v877, %v876
        %v899 = vpack.c.bf16 %v879, %v878
        %v900 = vpack.c.bf16 %v881, %v880
        %v901 = vpack.c.bf16 %v883, %v882
        %v902 = vpack.c.bf16 %v885, %v884
        %v903 = vpack.c.bf16 %v887, %v886
        %v904 = vld [vmem:[%s5] sm:$0xf]
        %905 = vmatpush.bf16.xpose.msra.mxu0 %v895
        %906 = vmatpush.bf16.xpose.msra.mxu0 %v894
        %907 = vmatpush.bf16.xpose.msra.mxu0 %v893
        %908 = vmatpush.bf16.xpose.msra.mxu0 %v892
        %909 = vmatpush.bf16.xpose.msra.mxu0 %v891
        %910 = vmatpush.bf16.xpose.msra.mxu0 %v890
        %911 = vmatpush.bf16.xpose.msra.mxu0 %v889
        %912 = vmatpush.bf16.xpose.msra.mxu0 %v888
        %913 = vmatmul.bf16.gmra.mxu0 %v904
        %v914 = vpop.f32.mrf.mxu0
        %v915 = vadd.f32 0.0, %v914
        %v916 = vpop.f32.mrf.mxu0
        %917 = vdwg.mxu0
        %918 = vmatpush.bf16.xpose.msra.mxu0 %v903
        %919 = vmatpush.bf16.xpose.msra.mxu0 %v902
        %920 = vmatpush.bf16.xpose.msra.mxu0 %v901
        %921 = vmatpush.bf16.xpose.msra.mxu0 %v900
        %922 = vmatpush.bf16.xpose.msra.mxu0 %v899
        %923 = vmatpush.bf16.xpose.msra.mxu0 %v898
        %924 = vmatpush.bf16.xpose.msra.mxu0 %v897
        %925 = vmatpush.bf16.xpose.msra.mxu0 %v896
        %926 = vmatmul.bf16.gmra.mxu0 %v904
        %v927 = vpop.f32.mrf.mxu0
        %v928 = vadd.f32 0.0, %v927
        %v929 = vpop.f32.mrf.mxu0
        %930 = vdwg.mxu0
        %s931 = sld [smem:[#allocation2]]
        %v932 = vstv %s931
        %v933 = vadd.f32 %v915, %v932
        %v934 = vadd.f32 %v928, %v932
        %v937 = vrot.slane %v934, 7
        %vm938 = vcmask 1040384
        %v939 = vsel %vm938, %v933, %v937
        %v941 = vlaneseq
        %vm942 = vcmp.ge.s32.totalorder %v941, 0
        %vm943 = vcmp.lt.s32.totalorder %v941, 256
        %vm944 = vmand %vm942, %vm943
        %945 = vst.msk [vmem:[%s285] sm:$0x3] %vm944, %v939
        %s946 = sand.u32 %s182, 1
        %s947 = scalar_lea.sflag [#allocation4], %s946
        %s948 = sand.u32 %s182, 1
        %s949 = smul.addr %s948, 2
        %s950 = scalar_lea.vmem [#allocation3], %s949
        // Predicated region
        $region49: #{tpu_custom_call.1} parent=47 // pred_check
          %p951 = pneg %p192
        $region50: #{tpu_custom_call.1} parent=47 // pred_check_branch
          %953 = sbr.rel (%p951) target = $region52
        $region51: #{tpu_custom_call.1} parent=47 // pred_region
          %955 = vsyncadd %s947, 0
          %s956 = smul.addr %s22, 2
          %s957 = scalar_lea.hbm %s7, %s956
          %s959 = sshll.u32 %s950, 4
          %s960 = int_to_ptr.vmem [resolvable:$true] %s959
          %s961 = sshll.u32 %s957, 4
          %s962 = int_to_ptr.hbm [resolvable:$true] %s961
          %964 = dma.vmem_to_hbm [thread:$0]  %s960, 32, %s962, %s947
        $region52: #{tpu_custom_call.1} parent=47 // pred_fallthru
          _
      $region48: #{tpu_custom_call.1} parent=5 // pred_fallthru
        _
      %p965 = scmp.le.s32.totalorder 2, %s17
      // Predicated region
      $region53: #{tpu_custom_call.1} parent=5 // pred_check
        %p966 = pneg %p965
      $region54: #{tpu_custom_call.1} parent=5 // pred_check_branch
        %968 = sbr.rel (%p966) target = $region56
      $region55: #{tpu_custom_call.1} parent=5 // pred_region
        %s969 = ssub.s32 %s17, 2
        // Predicated region
        $region57: #{tpu_custom_call.1} parent=55 // pred_check
          %p970 = pneg %p198
        $region58: #{tpu_custom_call.1} parent=55 // pred_check_branch
          %972 = sbr.rel (%p970) target = $region60
        $region59: #{tpu_custom_call.1} parent=55 // pred_region
          %s973 = sand.u32 %s183, 1
          %s974 = scalar_lea.sflag [#allocation4], %s973
          %s975 = sand.u32 %s183, 1
          %s976 = smul.addr %s975, 2
          %s977 = scalar_lea.vmem [#allocation3], %s976
          %979 = dma.done %s974, 32
        $region60: #{tpu_custom_call.1} parent=55 // pred_fallthru
          _
      $region56: #{tpu_custom_call.1} parent=5 // pred_fallthru
        _
    $region6: #{tpu_custom_call.1} parent=1 // loop_footer
      %s21 = sadd.s32 1, %s17
    $region7: #{tpu_custom_call.1} parent=1 // loop_footer_branch
      %16 = sbr.rel target = $region3
    $region8: #{tpu_custom_call.1} parent=1 // loop_exit
      _
    %980 = vsyncpa [#allocation4], 1
    %s981 = scalar_lea.sflag [#allocation4], 1
    %982 = vsyncpa %s981, 1

</llo_original>
